<compile_context>
chip_gen: v7x
topology: tpu7x:2x2x1
jax: 0.10.0
libtpu: 0.0.40
codegen_flags: <defaults>
</compile_context>

<pallas_src>
import jax
import jax.numpy as jnp
from jax.experimental import pallas as pl
from jax.experimental.pallas import tpu as pltpu

LANE = 128
SUBLANE = 8


def _round_up(n, m):
    return ((n + m - 1) // m) * m


def _vmem_capacity_bytes():
    try:
        info = pltpu.get_tpu_info()
        return int(getattr(info, "vmem_capacity_bytes", 64 * 1024 * 1024))
    except Exception:
        return 64 * 1024 * 1024  # conservative default (v7x physical VMEM)


def mlp_kernel(x_ref, w1_ref, b1_ref, w2_ref, b2_ref, w3_ref, b3_ref, o_ref):
    # x streams in its native dtype (e.g. f32); cast to the weight dtype on
    # the VPU here instead of a separate wrapper-side HBM cast pass.
    x = x_ref[...].astype(w1_ref.dtype)

    # Bias broadcasts hoisted: read once per grid step.
    b1 = b1_ref[...]
    b2 = b2_ref[...]
    b3 = b3_ref[...]

    # fc1 + ReLU (f32 accumulation on the MXU, f32 VPU math for bias/ReLU).
    h1 = jnp.dot(x, w1_ref[...], preferred_element_type=jnp.float32) + b1
    h1 = jnp.maximum(h1, 0.0)

    # fc2 + ReLU.
    h2 = jnp.dot(h1.astype(w2_ref.dtype), w2_ref[...],
                 preferred_element_type=jnp.float32) + b2
    h2 = jnp.maximum(h2, 0.0)

    # fc3 (lane-padded to 128 output columns -> unmasked full-vreg stores).
    out = jnp.dot(h2.astype(w3_ref.dtype), w3_ref[...],
                  preferred_element_type=jnp.float32) + b3
    o_ref[...] = out.astype(o_ref.dtype)


def prepare_params(params, compute_dtype=jnp.bfloat16):
    """One-time weight prep, hoisted out of the per-forward path.

    Lane-pads fc3 to a multiple of 128 output columns (zero columns -> exact)
    and casts weights to the compute dtype.  Biases stay f32 (bias-add / ReLU
    run in f32).  Returns (prepared_tuple, num_classes).
    """
    w1, b1, w2, b2, w3, b3 = params
    num_classes = w3.shape[1]
    n_pad = _round_up(num_classes, LANE)
    w3p = jnp.zeros((w3.shape[0], n_pad), w3.dtype).at[:, :num_classes].set(w3)
    b3p = jnp.zeros((1, n_pad), jnp.float32).at[:, :num_classes].set(
        b3.reshape(1, -1).astype(jnp.float32))
    prepared = (
        w1.astype(compute_dtype), b1.reshape(1, -1).astype(jnp.float32),
        w2.astype(compute_dtype), b2.reshape(1, -1).astype(jnp.float32),
        w3p.astype(compute_dtype), b3p,
    )
    return prepared, num_classes


def _choose_row_tile(B, D_in, n_pad, x_itemsize, out_itemsize, weight_bytes,
                     row_tile_max):
    """Pick the batch-tile height TB from an explicit VMEM budget."""
    vmem_cap = _vmem_capacity_bytes()
    # Use at most ~1/4 of physical VMEM for our buffers (headroom for the
    # compiler's own scratch); 128 MiB on v5e/v6e, 64 MiB on v7x.
    budget = max(4 << 20, vmem_cap // 4)
    # Double-buffered x tile + double-buffered output tile, per row.
    per_row = 2 * D_in * x_itemsize + 2 * n_pad * out_itemsize
    avail = max(budget - 2 * weight_bytes, per_row * SUBLANE)
    tb = min(row_tile_max, avail // per_row)
    tb = max(SUBLANE, (tb // SUBLANE) * SUBLANE)

    if tb >= B:
        if B >= 2 * SUBLANE:
            # Whole batch would fit in one tile: split in two multiple-of-8
            # tiles so v7x's second TensorCore gets work (grid >= 2 steps).
            tb = _round_up(-(-B // 2), SUBLANE)
        else:
            # Tiny batch: single full-extent block (any size allowed).
            tb = B
    return tb, vmem_cap


def mlp_forward(x, prepared, num_classes, *, out_dtype=jnp.bfloat16,
                row_tile_max=2048):
    """x: (B, ...) -> flattened to (B, D_in). Returns (B, num_classes) f32."""
    w1c, b1, w2c, b2, w3c, b3p = prepared
    B = x.shape[0]
    x2d = x.reshape(B, -1)              # no dtype cast: stream native dtype
    D_in = x2d.shape[1]
    h1_dim, h2_dim = w1c.shape[1], w2c.shape[1]
    n_pad = w3c.shape[1]

    x_itemsize = x2d.dtype.itemsize
    out_itemsize = jnp.dtype(out_dtype).itemsize
    weight_bytes = (w1c.size * w1c.dtype.itemsize
                    + w2c.size * w2c.dtype.itemsize
                    + w3c.size * w3c.dtype.itemsize
                    + (b1.size + b2.size + b3p.size) * 4)

    TB, vmem_cap = _choose_row_tile(B, D_in, n_pad, x_itemsize, out_itemsize,
                                    weight_bytes, row_tile_max)
    num_steps = (B + TB - 1) // TB      # partial last tile handled by Pallas
    grid = (num_steps,)

    per_row = 2 * D_in * x_itemsize + 2 * n_pad * out_itemsize
    vmem_needed = TB * per_row + 2 * weight_bytes + (2 << 20)
    vmem_limit = int(min(max(vmem_needed, 32 << 20), vmem_cap * 3 // 4))

    def resident(a):
        # Full extent, constant index_map -> fetched once, VMEM-resident.
        nd = a.ndim
        return pl.BlockSpec(a.shape, lambda i, _nd=nd: (0,) * _nd)

    flops = 2 * B * (D_in * h1_dim + h1_dim * h2_dim + h2_dim * n_pad)
    bytes_accessed = (B * D_in * x_itemsize        # x tiles (single pass)
                      + weight_bytes               # weights + biases
                      + B * n_pad * out_itemsize)  # output writeback

    out = pl.pallas_call(
        mlp_kernel,
        out_shape=jax.ShapeDtypeStruct((B, n_pad), out_dtype),
        grid_spec=pltpu.PrefetchScalarGridSpec(
            num_scalar_prefetch=0,
            grid=grid,
            in_specs=[
                pl.BlockSpec((TB, D_in), lambda i: (i, 0)),  # x: batch-tiled
                resident(w1c), resident(b1),
                resident(w2c), resident(b2),
                resident(w3c), resident(b3p),
            ],
            out_specs=pl.BlockSpec((TB, n_pad), lambda i: (i, 0)),
        ),
        compiler_params=pltpu.CompilerParams(
            dimension_semantics=("parallel",),
            vmem_limit_bytes=vmem_limit,
        ),
        cost_estimate=pl.CostEstimate(
            flops=int(flops), transcendentals=0,
            bytes_accessed=int(bytes_accessed)),
    )(x2d, w1c, b1, w2c, b2, w3c, b3p)

    # Slice off lane padding; upcast to f32 during the slice copy (free).
    return out[:, :num_classes].astype(jnp.float32)


def init_params(key, input_dim, hidden_dim1=64, hidden_dim2=16, num_classes=6):
    """PyTorch-style uniform init, weights stored (in, out)."""
    ks = jax.random.split(key, 6)

    def linear(kw, kb, d_in, d_out):
        bound = 1.0 / jnp.sqrt(d_in)
        w = jax.random.uniform(kw, (d_in, d_out), jnp.float32, -bound, bound)
        b = jax.random.uniform(kb, (1, d_out), jnp.float32, -bound, bound)
        return w, b

    w1, b1 = linear(ks[0], ks[1], input_dim, hidden_dim1)
    w2, b2 = linear(ks[2], ks[3], hidden_dim1, hidden_dim2)
    w3, b3 = linear(ks[4], ks[5], hidden_dim2, num_classes)
    return (w1, b1, w2, b2, w3, b3)


def mlp_reference(x, params):
    """Pure-JAX f32 reference for correctness check."""
    w1, b1, w2, b2, w3, b3 = params
    h = x.reshape(x.shape[0], -1)
    h = jnp.maximum(h @ w1 + b1, 0.0)
    h = jnp.maximum(h @ w2 + b2, 0.0)
    return h @ w3 + b3


if __name__ == "__main__":
    key = jax.random.PRNGKey(0)
    k_x, k_p, k_x2 = jax.random.split(key, 3)

    # Small shapes consistent with the module's forward (it flattens whatever
    # comes in): "images" of 16x16 -> input_dim=256.
    H, W = 16, 16
    input_dim = H * W
    params = init_params(k_p, input_dim, hidden_dim1=64, hidden_dim2=16,
                         num_classes=6)

    # --- f32 compute path, tiny batch (single full-extent tile): tight check.
    B = 4
    x = jax.random.normal(k_x, (B, H, W), dtype=jnp.float32)
    ref = mlp_reference(x, params)
    prep_f32, nc = prepare_params(params, compute_dtype=jnp.float32)
    out_f32 = jax.block_until_ready(
        mlp_forward(x, prep_f32, nc, out_dtype=jnp.float32))
    assert out_f32.shape == (B, 6)
    assert jnp.allclose(out_f32, ref, atol=1e-4, rtol=1e-4), "f32 mismatch"

    # --- bf16 fast path, batch not a tile multiple (multi-step grid with a
    # partial last tile + bf16 writeback): loose tolerance vs f32 reference.
    B2 = 100
    x2 = jax.random.normal(k_x2, (B2, H, W), dtype=jnp.float32)
    ref2 = mlp_reference(x2, params)
    prep_bf16, nc = prepare_params(params, compute_dtype=jnp.bfloat16)
    out_bf16 = jax.block_until_ready(mlp_forward(x2, prep_bf16, nc))
    assert out_bf16.shape == (B2, 6)
    assert jnp.allclose(out_bf16, ref2, atol=5e-2, rtol=5e-2), "bf16 mismatch"

    print("KERNEL_OK")
</pallas_src>

<mosaic_0001>
module attributes {stable_mosaic.version = 11 : i64} {
  func.func @mlp_kernel(%arg0: i32, %arg1: memref<4x256xf32, #tpu.memory_space<vmem>>, %arg2: memref<256x64xf32, #tpu.memory_space<vmem>>, %arg3: memref<1x64xf32, #tpu.memory_space<vmem>>, %arg4: memref<64x16xf32, #tpu.memory_space<vmem>>, %arg5: memref<1x16xf32, #tpu.memory_space<vmem>>, %arg6: memref<16x128xf32, #tpu.memory_space<vmem>>, %arg7: memref<1x128xf32, #tpu.memory_space<vmem>>, %arg8: memref<4x128xf32, #tpu.memory_space<vmem>>) attributes {dimension_semantics = [#tpu.dimension_semantics<parallel>], iteration_bounds = array<i64: 1>, scalar_prefetch = 0 : i64, scratch_operands = 0 : i64, tpu.core_type = #tpu.core_type<tc>, window_params = [{transform_indices = @transform_0, window_bounds = array<i64: 4, 256>}, {pipeline_mode = #tpu.pipeline_mode<synchronous>, transform_indices = @transform_1, window_bounds = array<i64: 256, 64>}, {pipeline_mode = #tpu.pipeline_mode<synchronous>, transform_indices = @transform_2, window_bounds = array<i64: 1, 64>}, {pipeline_mode = #tpu.pipeline_mode<synchronous>, transform_indices = @transform_3, window_bounds = array<i64: 64, 16>}, {pipeline_mode = #tpu.pipeline_mode<synchronous>, transform_indices = @transform_4, window_bounds = array<i64: 1, 16>}, {pipeline_mode = #tpu.pipeline_mode<synchronous>, transform_indices = @transform_5, window_bounds = array<i64: 16, 128>}, {pipeline_mode = #tpu.pipeline_mode<synchronous>, transform_indices = @transform_6, window_bounds = array<i64: 1, 128>}, {transform_indices = @transform_7, window_bounds = array<i64: 4, 128>}]} {
    %c0 = arith.constant 0 : index
    %c0_0 = arith.constant 0 : index
    %0 = vector.load %arg1[%c0, %c0_0] : memref<4x256xf32, #tpu.memory_space<vmem>>, vector<4x256xf32>
    %c0_1 = arith.constant 0 : index
    %c0_2 = arith.constant 0 : index
    %1 = vector.load %arg3[%c0_1, %c0_2] : memref<1x64xf32, #tpu.memory_space<vmem>>, vector<1x64xf32>
    %c0_3 = arith.constant 0 : index
    %c0_4 = arith.constant 0 : index
    %2 = vector.load %arg5[%c0_3, %c0_4] : memref<1x16xf32, #tpu.memory_space<vmem>>, vector<1x16xf32>
    %c0_5 = arith.constant 0 : index
    %c0_6 = arith.constant 0 : index
    %3 = vector.load %arg7[%c0_5, %c0_6] : memref<1x128xf32, #tpu.memory_space<vmem>>, vector<1x128xf32>
    %c0_7 = arith.constant 0 : index
    %c0_8 = arith.constant 0 : index
    %4 = vector.load %arg2[%c0_7, %c0_8] : memref<256x64xf32, #tpu.memory_space<vmem>>, vector<256x64xf32>
    %cst = arith.constant dense<0.000000e+00> : vector<4x64xf32>
    %5 = tpu.matmul %0, %4, %cst {dimension_numbers = #tpu.dot_dimension_numbers<[1], [0], [0], [1], [0, 0, 1, 1], [], []>} : vector<4x256xf32>, vector<256x64xf32>, vector<4x64xf32> -> vector<4x64xf32>
    %6 = vector.broadcast %1 : vector<1x64xf32> to vector<4x64xf32>
    %7 = arith.addf %5, %6 : vector<4x64xf32>
    %cst_9 = arith.constant 0.000000e+00 : f32
    %8 = vector.broadcast %cst_9 : f32 to vector<4x64xf32>
    %9 = arith.maximumf %7, %8 : vector<4x64xf32>
    %c0_10 = arith.constant 0 : index
    %c0_11 = arith.constant 0 : index
    %10 = vector.load %arg4[%c0_10, %c0_11] : memref<64x16xf32, #tpu.memory_space<vmem>>, vector<64x16xf32>
    %cst_12 = arith.constant dense<0.000000e+00> : vector<4x16xf32>
    %11 = tpu.matmul %9, %10, %cst_12 {dimension_numbers = #tpu.dot_dimension_numbers<[1], [0], [0], [1], [0, 0, 1, 1], [], []>} : vector<4x64xf32>, vector<64x16xf32>, vector<4x16xf32> -> vector<4x16xf32>
    %12 = vector.broadcast %2 : vector<1x16xf32> to vector<4x16xf32>
    %13 = arith.addf %11, %12 : vector<4x16xf32>
    %cst_13 = arith.constant 0.000000e+00 : f32
    %14 = vector.broadcast %cst_13 : f32 to vector<4x16xf32>
    %15 = arith.maximumf %13, %14 : vector<4x16xf32>
    %c0_14 = arith.constant 0 : index
    %c0_15 = arith.constant 0 : index
    %16 = vector.load %arg6[%c0_14, %c0_15] : memref<16x128xf32, #tpu.memory_space<vmem>>, vector<16x128xf32>
    %cst_16 = arith.constant dense<0.000000e+00> : vector<4x128xf32>
    %17 = tpu.matmul %15, %16, %cst_16 {dimension_numbers = #tpu.dot_dimension_numbers<[1], [0], [0], [1], [0, 0, 1, 1], [], []>} : vector<4x16xf32>, vector<16x128xf32>, vector<4x128xf32> -> vector<4x128xf32>
    %18 = vector.broadcast %3 : vector<1x128xf32> to vector<4x128xf32>
    %19 = arith.addf %17, %18 : vector<4x128xf32>
    %c0_17 = arith.constant 0 : index
    %c0_18 = arith.constant 0 : index
    %20 = vector.load %arg8[%c0_17, %c0_18] : memref<4x128xf32, #tpu.memory_space<vmem>>, vector<4x128xf32>
    tpu.vector_store %arg8[%c0_17, %c0_18], %19 {strides = array<i32>} : memref<4x128xf32, #tpu.memory_space<vmem>>, vector<4x128xf32>,
    return
  }
  func.func @transform_0(%arg0: i32) -> (i32, i32) {
    %c0_i32 = arith.constant 0 : i32
    %c0_i32_0 = arith.constant 0 : i32
    return %arg0, %c0_i32 : i32, i32
  }
  func.func @transform_1(%arg0: i32) -> (i32, i32) {
    %c0_i32 = arith.constant 0 : i32
    %c0_i32_0 = arith.constant 0 : i32
    %c0_i32_1 = arith.constant 0 : i32
    return %c0_i32, %c0_i32_0 : i32, i32
  }
  func.func @transform_2(%arg0: i32) -> (i32, i32) {
    %c0_i32 = arith.constant 0 : i32
    %c0_i32_0 = arith.constant 0 : i32
    %c0_i32_1 = arith.constant 0 : i32
    return %c0_i32, %c0_i32_0 : i32, i32
  }
  func.func @transform_3(%arg0: i32) -> (i32, i32) {
    %c0_i32 = arith.constant 0 : i32
    %c0_i32_0 = arith.constant 0 : i32
    %c0_i32_1 = arith.constant 0 : i32
    return %c0_i32, %c0_i32_0 : i32, i32
  }
  func.func @transform_4(%arg0: i32) -> (i32, i32) {
    %c0_i32 = arith.constant 0 : i32
    %c0_i32_0 = arith.constant 0 : i32
    %c0_i32_1 = arith.constant 0 : i32
    return %c0_i32, %c0_i32_0 : i32, i32
  }
  func.func @transform_5(%arg0: i32) -> (i32, i32) {
    %c0_i32 = arith.constant 0 : i32
    %c0_i32_0 = arith.constant 0 : i32
    %c0_i32_1 = arith.constant 0 : i32
    return %c0_i32, %c0_i32_0 : i32, i32
  }
  func.func @transform_6(%arg0: i32) -> (i32, i32) {
    %c0_i32 = arith.constant 0 : i32
    %c0_i32_0 = arith.constant 0 : i32
    %c0_i32_1 = arith.constant 0 : i32
    return %c0_i32, %c0_i32_0 : i32, i32
  }
  func.func @transform_7(%arg0: i32) -> (i32, i32) {
    %c0_i32 = arith.constant 0 : i32
    %c0_i32_0 = arith.constant 0 : i32
    return %arg0, %c0_i32 : i32, i32
  }
}

</mosaic_0001>

<llo_original>
// kernel: tpu_custom_call.1
$region0: #{tpu_custom_call.1}
  #allocation0 [shape = 'u32[]', space=smem, size = 0x4, offset = 0x4, fixed_abs, tag = 'smem constant byte address 0x4 - core index']
  #allocation1 [shape = 'u32[144,128]{1,0:T(1,128)}', space=vmem, size = 0x12000, scoped, tag = 'internal scratch']
  %s0 = inlined_call_operand.vmem [shape: f32[4,256], index: 0, kind: input, shape index: {}]
  %s1 = inlined_call_operand.vmem [shape: f32[256,64], index: 1, kind: input, shape index: {}]
  %s2 = inlined_call_operand.vmem [shape: f32[1,64], index: 2, kind: input, shape index: {}]
  %s3 = inlined_call_operand.vmem [shape: f32[64,16], index: 3, kind: input, shape index: {}]
  %s4 = inlined_call_operand.vmem [shape: f32[1,16], index: 4, kind: input, shape index: {}]
  %s5 = inlined_call_operand.vmem [shape: f32[16,128], index: 5, kind: input, shape index: {}]
  %s6 = inlined_call_operand.vmem [shape: f32[1,128], index: 6, kind: input, shape index: {}]
  %s7 = inlined_call_operand.hbm [shape: f32[4,128], index: 7, kind: output, shape index: {}]
  %s8 = sld [smem:[#allocation0]]
  $region38: #{tpu_custom_call.1} parent=0
    _
  %s10 = ssub.s32 1, %s8
  %s11 = scalar_select 0, %s10, %s8
  $region1: #{tpu_custom_call.1} parent=0
    #allocation2 [shape = 'u8[2048]{0}', space=vmem, size = 0x800, scoped, tag = 'output window, operand 0, single buffered']
    #allocation3 [shape = 's32[1]{0}', space=sflag, size = 0x4, scoped, tag = 'scoped memory for tpu_custom_call.1']
    %12 = vsyncpa [#allocation3], 0
    // Predicated region
    $region2: #{tpu_custom_call.1} parent=1 // pred_check
      _
    $region3: #{tpu_custom_call.1} parent=1 // pred_check_branch
      %14 = sbr.rel (0) target = $region5
    $region4: #{tpu_custom_call.1} parent=1 // pred_region
      _
    $region5: #{tpu_custom_call.1} parent=1 // pred_fallthru
      _
    // Predicated region
    $region6: #{tpu_custom_call.1} parent=1 // pred_check
      _
    $region7: #{tpu_custom_call.1} parent=1 // pred_check_branch
      %16 = sbr.rel (0) target = $region9
    $region8: #{tpu_custom_call.1} parent=1 // pred_region
      _
    $region9: #{tpu_custom_call.1} parent=1 // pred_fallthru
      _
    // Predicated region
    $region10: #{tpu_custom_call.1} parent=1 // pred_check
      _
    $region11: #{tpu_custom_call.1} parent=1 // pred_check_branch
      %18 = sbr.rel (0) target = $region13
    $region12: #{tpu_custom_call.1} parent=1 // pred_region
      _
    $region13: #{tpu_custom_call.1} parent=1 // pred_fallthru
      _
    // Predicated region
    $region14: #{tpu_custom_call.1} parent=1 // pred_check
      _
    $region15: #{tpu_custom_call.1} parent=1 // pred_check_branch
      %20 = sbr.rel (0) target = $region17
    $region16: #{tpu_custom_call.1} parent=1 // pred_region
      _
    $region17: #{tpu_custom_call.1} parent=1 // pred_fallthru
      _
    // Predicated region
    $region18: #{tpu_custom_call.1} parent=1 // pred_check
      _
    $region19: #{tpu_custom_call.1} parent=1 // pred_check_branch
      %22 = sbr.rel (0) target = $region21
    $region20: #{tpu_custom_call.1} parent=1 // pred_region
      _
    $region21: #{tpu_custom_call.1} parent=1 // pred_fallthru
      _
    // Predicated region
    $region22: #{tpu_custom_call.1} parent=1 // pred_check
      _
    $region23: #{tpu_custom_call.1} parent=1 // pred_check_branch
      %24 = sbr.rel (0) target = $region25
    $region24: #{tpu_custom_call.1} parent=1 // pred_region
      _
    $region25: #{tpu_custom_call.1} parent=1 // pred_fallthru
      _
    // Predicated region
    $region26: #{tpu_custom_call.1} parent=1 // pred_check
      _
    $region27: #{tpu_custom_call.1} parent=1 // pred_check_branch
      %26 = sbr.rel (0) target = $region29
    $region28: #{tpu_custom_call.1} parent=1 // pred_region
      _
    $region29: #{tpu_custom_call.1} parent=1 // pred_fallthru
      _
    %v27 = vld [vmem:[%s0] sm:$0xff]
    %v28 = vld [vmem:[%s2] sm:$0x1]
    %v29 = vld [vmem:[%s4] sm:$0x1]
    %v30 = vld [vmem:[%s6] sm:$0x1]
    %v31 = vld [vmem:[%s1] sm:$0xff]
    %v32 = vld [vmem:[%s1 + $0x8] sm:$0xff]
    %v33 = vld [vmem:[%s1 + $0x10] sm:$0xff]
    %v34 = vld [vmem:[%s1 + $0x18] sm:$0xff]
    %v35 = vld [vmem:[%s1 + $0x20] sm:$0xff]
    %v36 = vld [vmem:[%s1 + $0x28] sm:$0xff]
    %v37 = vld [vmem:[%s1 + $0x30] sm:$0xff]
    %v38 = vld [vmem:[%s1 + $0x38] sm:$0xff]
    %v39 = vld [vmem:[%s1 + $0x40] sm:$0xff]
    %v40 = vld [vmem:[%s1 + $0x48] sm:$0xff]
    %v41 = vld [vmem:[%s1 + $0x50] sm:$0xff]
    %v42 = vld [vmem:[%s1 + $0x58] sm:$0xff]
    %v43 = vld [vmem:[%s1 + $0x60] sm:$0xff]
    %v44 = vld [vmem:[%s1 + $0x68] sm:$0xff]
    %v45 = vld [vmem:[%s1 + $0x70] sm:$0xff]
    %v46 = vld [vmem:[%s1 + $0x78] sm:$0xff]
    %v47 = vld [vmem:[%s1 + $0x80] sm:$0xff]
    %v48 = vld [vmem:[%s1 + $0x88] sm:$0xff]
    %v49 = vld [vmem:[%s1 + $0x90] sm:$0xff]
    %v50 = vld [vmem:[%s1 + $0x98] sm:$0xff]
    %v51 = vld [vmem:[%s1 + $0xa0] sm:$0xff]
    %v52 = vld [vmem:[%s1 + $0xa8] sm:$0xff]
    %v53 = vld [vmem:[%s1 + $0xb0] sm:$0xff]
    %v54 = vld [vmem:[%s1 + $0xb8] sm:$0xff]
    %v55 = vld [vmem:[%s1 + $0xc0] sm:$0xff]
    %v56 = vld [vmem:[%s1 + $0xc8] sm:$0xff]
    %v57 = vld [vmem:[%s1 + $0xd0] sm:$0xff]
    %v58 = vld [vmem:[%s1 + $0xd8] sm:$0xff]
    %v59 = vld [vmem:[%s1 + $0xe0] sm:$0xff]
    %v60 = vld [vmem:[%s1 + $0xe8] sm:$0xff]
    %v61 = vld [vmem:[%s1 + $0xf0] sm:$0xff]
    %v62 = vld [vmem:[%s1 + $0xf8] sm:$0xff]
    %v64 = vlaneseq
    %v65 = vshrl.u32 %v64, 7
    %v66 = vsub.s32 0, %v65
    %v67 = vrot.slane %v28, %v66
    %v70 = vcombine.high %v27, %v27
    %72 = vmatprep.subr.mxu0 0.0
    %73 = vmatpush1.msra.mxu0 %v31
    %74 = vmatprep.subr.mxu0 0.0
    %75 = vmatpush1.msra.mxu0 %v32
    %76 = vmatprep.subr.mxu0 0.0
    %77 = vmatpush1.msra.mxu0 %v33
    %78 = vmatprep.subr.mxu0 0.0
    %79 = vmatpush1.msra.mxu0 %v34
    %80 = vmatprep.subr.mxu0 0.0
    %81 = vmatpush1.msra.mxu0 %v35
    %82 = vmatprep.subr.mxu0 0.0
    %83 = vmatpush1.msra.mxu0 %v36
    %84 = vmatprep.subr.mxu0 0.0
    %85 = vmatpush1.msra.mxu0 %v37
    %86 = vmatprep.subr.mxu0 0.0
    %87 = vmatpush1.msra.mxu0 %v38
    %88 = vmatprep.subr.mxu0 0.0
    %89 = vmatpush1.msra.mxu0 %v39
    %90 = vmatprep.subr.mxu0 0.0
    %91 = vmatpush1.msra.mxu0 %v40
    %92 = vmatprep.subr.mxu0 0.0
    %93 = vmatpush1.msra.mxu0 %v41
    %94 = vmatprep.subr.mxu0 0.0
    %95 = vmatpush1.msra.mxu0 %v42
    %96 = vmatprep.subr.mxu0 0.0
    %97 = vmatpush1.msra.mxu0 %v43
    %98 = vmatprep.subr.mxu0 0.0
    %99 = vmatpush1.msra.mxu0 %v44
    %100 = vmatprep.subr.mxu0 0.0
    %101 = vmatpush1.msra.mxu0 %v45
    %102 = vmatprep.subr.mxu0 0.0
    %103 = vmatpush1.msra.mxu0 %v46
    %104 = vmatprep.subr.mxu0 0.0
    %105 = vmatpush1.msra.mxu0 %v47
    %106 = vmatprep.subr.mxu0 0.0
    %107 = vmatpush1.msra.mxu0 %v48
    %108 = vmatprep.subr.mxu0 0.0
    %109 = vmatpush1.msra.mxu0 %v49
    %110 = vmatprep.subr.mxu0 0.0
    %111 = vmatpush1.msra.mxu0 %v50
    %112 = vmatprep.subr.mxu0 0.0
    %113 = vmatpush1.msra.mxu0 %v51
    %114 = vmatprep.subr.mxu0 0.0
    %115 = vmatpush1.msra.mxu0 %v52
    %116 = vmatprep.subr.mxu0 0.0
    %117 = vmatpush1.msra.mxu0 %v53
    %118 = vmatprep.subr.mxu0 0.0
    %119 = vmatpush1.msra.mxu0 %v54
    %120 = vmatprep.subr.mxu0 0.0
    %121 = vmatpush1.msra.mxu0 %v55
    %122 = vmatprep.subr.mxu0 0.0
    %123 = vmatpush1.msra.mxu0 %v56
    %124 = vmatprep.subr.mxu0 0.0
    %125 = vmatpush1.msra.mxu0 %v57
    %126 = vmatprep.subr.mxu0 0.0
    %127 = vmatpush1.msra.mxu0 %v58
    %128 = vmatprep.subr.mxu0 0.0
    %129 = vmatpush1.msra.mxu0 %v59
    %130 = vmatprep.subr.mxu0 0.0
    %131 = vmatpush1.msra.mxu0 %v60
    %132 = vmatprep.subr.mxu0 0.0
    %133 = vmatpush1.msra.mxu0 %v61
    %134 = vmatprep.subr.mxu0 0.0
    %135 = vmatpush1.msra.mxu0 %v62
    %136 = vmatprep.mubr.f32.mxu0 %v70
    %137 = vmatmul.mubr.f32.gmra.mrb[0].mxu0 %v27
    %v138 = vpop.f32.mrb[0].mxu0
    %v139 = vadd.f32 %v67, %v138
    %v140 = vpop.f32.mrb[0].mxu0
    %141 = vdwg.mxu0
    %v142 = vmax.f32 %v139, 0.0
    %v143 = vld [vmem:[%s3] sm:$0xff]
    %v144 = vld [vmem:[%s3 + $0x8] sm:$0xff]
    %v145 = vld [vmem:[%s3 + $0x10] sm:$0xff]
    %v146 = vld [vmem:[%s3 + $0x18] sm:$0xff]
    %v147 = vld [vmem:[%s3 + $0x20] sm:$0xff]
    %v148 = vld [vmem:[%s3 + $0x28] sm:$0xff]
    %v149 = vld [vmem:[%s3 + $0x30] sm:$0xff]
    %v150 = vld [vmem:[%s3 + $0x38] sm:$0xff]
    %v152 = vlaneseq
    %v153 = vshrl.u32 %v152, 7
    %v154 = vsub.s32 0, %v153
    %v155 = vrot.slane %v29, %v154
    %vm157 = vcmask 523264
    %v159 = vsel %vm157, %v142, 0
    %161 = vmatprep.subr.mxu0 0.0
    %162 = vmatpush1.msra.mxu0 %v143
    %163 = vmatprep.subr.mxu0 0.0
    %164 = vmatpush1.msra.mxu0 %v144
    %165 = vmatprep.subr.mxu0 0.0
    %166 = vmatpush1.msra.mxu0 %v145
    %167 = vmatprep.subr.mxu0 0.0
    %168 = vmatpush1.msra.mxu0 %v146
    %169 = vmatprep.subr.mxu0 0.0
    %170 = vmatpush1.msra.mxu0 %v147
    %171 = vmatprep.subr.mxu0 0.0
    %172 = vmatpush1.msra.mxu0 %v148
    %173 = vmatprep.subr.mxu0 0.0
    %174 = vmatpush1.msra.mxu0 %v149
    %175 = vmatprep.subr.mxu0 0.0
    %176 = vmatpush1.msra.mxu0 %v150
    %177 = vmatprep.subr.mxu0 0.0
    %178 = vmatpush1.msra.mxu0 0.0
    %179 = vmatprep.subr.mxu0 0.0
    %180 = vmatpush1.msra.mxu0 0.0
    %181 = vmatprep.subr.mxu0 0.0
    %182 = vmatpush1.msra.mxu0 0.0
    %183 = vmatprep.subr.mxu0 0.0
    %184 = vmatpush1.msra.mxu0 0.0
    %185 = vmatprep.subr.mxu0 0.0
    %186 = vmatpush1.msra.mxu0 0.0
    %187 = vmatprep.subr.mxu0 0.0
    %188 = vmatpush1.msra.mxu0 0.0
    %189 = vmatprep.subr.mxu0 0.0
    %190 = vmatpush1.msra.mxu0 0.0
    %191 = vmatprep.subr.mxu0 0.0
    %192 = vmatpush1.msra.mxu0 0.0
    %193 = vmatprep.subr.mxu0 0.0
    %194 = vmatpush1.msra.mxu0 0.0
    %195 = vmatprep.subr.mxu0 0.0
    %196 = vmatpush1.msra.mxu0 0.0
    %197 = vmatprep.subr.mxu0 0.0
    %198 = vmatpush1.msra.mxu0 0.0
    %199 = vmatprep.subr.mxu0 0.0
    %200 = vmatpush1.msra.mxu0 0.0
    %201 = vmatprep.subr.mxu0 0.0
    %202 = vmatpush1.msra.mxu0 0.0
    %203 = vmatprep.subr.mxu0 0.0
    %204 = vmatpush1.msra.mxu0 0.0
    %205 = vmatprep.subr.mxu0 0.0
    %206 = vmatpush1.msra.mxu0 0.0
    %207 = vmatprep.subr.mxu0 0.0
    %208 = vmatpush1.msra.mxu0 0.0
    %209 = vmatprep.subr.mxu0 0.0
    %210 = vmatpush1.msra.mxu0 0.0
    %211 = vmatprep.subr.mxu0 0.0
    %212 = vmatpush1.msra.mxu0 0.0
    %213 = vmatprep.subr.mxu0 0.0
    %214 = vmatpush1.msra.mxu0 0.0
    %215 = vmatprep.subr.mxu0 0.0
    %216 = vmatpush1.msra.mxu0 0.0
    %217 = vmatprep.subr.mxu0 0.0
    %218 = vmatpush1.msra.mxu0 0.0
    %219 = vmatprep.subr.mxu0 0.0
    %220 = vmatpush1.msra.mxu0 0.0
    %221 = vmatprep.subr.mxu0 0.0
    %222 = vmatpush1.msra.mxu0 0.0
    %223 = vmatprep.subr.mxu0 0.0
    %224 = vmatpush1.msra.mxu0 0.0
    %225 = vmatprep.mubr.f32.mxu0 0.0
    %226 = vmatmul.mubr.f32.gmra.mrb[0].mxu0 %v159
    %v227 = vpop.f32.mrb[0].mxu0
    %v228 = vadd.f32 %v155, %v227
    %v229 = vpop.f32.mrb[0].mxu0
    %230 = vdwg.mxu0
    %v231 = vmax.f32 %v228, 0.0
    %v232 = vld [vmem:[%s5] sm:$0xff]
    %v233 = vld [vmem:[%s5 + $0x8] sm:$0xff]
    %v235 = vlaneseq
    %v236 = vshrl.u32 %v235, 7
    %v237 = vsub.s32 0, %v236
    %v238 = vrot.slane %v30, %v237
    %vm240 = vcmask 130048
    %v242 = vsel %vm240, %v231, 0
    %244 = vmatprep.subr.mxu0 0.0
    %245 = vmatpush1.msra.mxu0 %v232
    %246 = vmatprep.subr.mxu0 0.0
    %247 = vmatpush1.msra.mxu0 %v233
    %248 = vmatprep.subr.mxu0 0.0
    %249 = vmatpush1.msra.mxu0 0.0
    %250 = vmatprep.subr.mxu0 0.0
    %251 = vmatpush1.msra.mxu0 0.0
    %252 = vmatprep.subr.mxu0 0.0
    %253 = vmatpush1.msra.mxu0 0.0
    %254 = vmatprep.subr.mxu0 0.0
    %255 = vmatpush1.msra.mxu0 0.0
    %256 = vmatprep.subr.mxu0 0.0
    %257 = vmatpush1.msra.mxu0 0.0
    %258 = vmatprep.subr.mxu0 0.0
    %259 = vmatpush1.msra.mxu0 0.0
    %260 = vmatprep.subr.mxu0 0.0
    %261 = vmatpush1.msra.mxu0 0.0
    %262 = vmatprep.subr.mxu0 0.0
    %263 = vmatpush1.msra.mxu0 0.0
    %264 = vmatprep.subr.mxu0 0.0
    %265 = vmatpush1.msra.mxu0 0.0
    %266 = vmatprep.subr.mxu0 0.0
    %267 = vmatpush1.msra.mxu0 0.0
    %268 = vmatprep.subr.mxu0 0.0
    %269 = vmatpush1.msra.mxu0 0.0
    %270 = vmatprep.subr.mxu0 0.0
    %271 = vmatpush1.msra.mxu0 0.0
    %272 = vmatprep.subr.mxu0 0.0
    %273 = vmatpush1.msra.mxu0 0.0
    %274 = vmatprep.subr.mxu0 0.0
    %275 = vmatpush1.msra.mxu0 0.0
    %276 = vmatprep.subr.mxu0 0.0
    %277 = vmatpush1.msra.mxu0 0.0
    %278 = vmatprep.subr.mxu0 0.0
    %279 = vmatpush1.msra.mxu0 0.0
    %280 = vmatprep.subr.mxu0 0.0
    %281 = vmatpush1.msra.mxu0 0.0
    %282 = vmatprep.subr.mxu0 0.0
    %283 = vmatpush1.msra.mxu0 0.0
    %284 = vmatprep.subr.mxu0 0.0
    %285 = vmatpush1.msra.mxu0 0.0
    %286 = vmatprep.subr.mxu0 0.0
    %287 = vmatpush1.msra.mxu0 0.0
    %288 = vmatprep.subr.mxu0 0.0
    %289 = vmatpush1.msra.mxu0 0.0
    %290 = vmatprep.subr.mxu0 0.0
    %291 = vmatpush1.msra.mxu0 0.0
    %292 = vmatprep.subr.mxu0 0.0
    %293 = vmatpush1.msra.mxu0 0.0
    %294 = vmatprep.subr.mxu0 0.0
    %295 = vmatpush1.msra.mxu0 0.0
    %296 = vmatprep.subr.mxu0 0.0
    %297 = vmatpush1.msra.mxu0 0.0
    %298 = vmatprep.subr.mxu0 0.0
    %299 = vmatpush1.msra.mxu0 0.0
    %300 = vmatprep.subr.mxu0 0.0
    %301 = vmatpush1.msra.mxu0 0.0
    %302 = vmatprep.subr.mxu0 0.0
    %303 = vmatpush1.msra.mxu0 0.0
    %304 = vmatprep.subr.mxu0 0.0
    %305 = vmatpush1.msra.mxu0 0.0
    %306 = vmatprep.subr.mxu0 0.0
    %307 = vmatpush1.msra.mxu0 0.0
    %308 = vmatprep.mubr.f32.mxu0 0.0
    %309 = vmatmul.mubr.f32.gmra.mrb[0].mxu0 %v242
    %v310 = vpop.f32.mrb[0].mxu0
    %v311 = vadd.f32 %v238, %v310
    %v312 = vpop.f32.mrb[0].mxu0
    %313 = vdwg.mxu0
    %314 = vst [vmem:[#allocation2] sm:$0xf] %v311
    // Predicated region
    $region30: #{tpu_custom_call.1} parent=1 // pred_check
      _
    $region31: #{tpu_custom_call.1} parent=1 // pred_check_branch
      %316 = sbr.rel (0) target = $region33
    $region32: #{tpu_custom_call.1} parent=1 // pred_region
      %s318 = ssub.s32 64, 64
      %319 = vsyncadd [#allocation3], %s318
      %s321 = sshll.u32 [#allocation2], 4
      %s322 = int_to_ptr.vmem [resolvable:$true] %s321
      %324 = dma.vmem_to_hbm [thread:$0]  %s322, 64, %s7, [#allocation3]
    $region33: #{tpu_custom_call.1} parent=1 // pred_fallthru
      _
    // Predicated region
    $region34: #{tpu_custom_call.1} parent=1 // pred_check
      _
    $region35: #{tpu_custom_call.1} parent=1 // pred_check_branch
      %326 = sbr.rel (0) target = $region37
    $region36: #{tpu_custom_call.1} parent=1 // pred_region
      %327 = dma.done [#allocation3], 64
    $region37: #{tpu_custom_call.1} parent=1 // pred_fallthru
      _
    %328 = vsyncpa [#allocation3], 1

</llo_original>
